<compile_context>
chip_gen: v7x
topology: tpu7x:2x2x1
jax: 0.10.0
libtpu: 0.0.40
codegen_flags: <defaults>
</compile_context>

<pallas_src>
import functools

import jax
import jax.numpy as jnp
from jax.experimental import pallas as pl
from jax.experimental.pallas import tpu as pltpu

LANE = 128
SUBLANE = 8


def _round_up(x, m):
    return ((x + m - 1) // m) * m


def _cnn_kernel(x_ref, w_ref, b_ref, o_ref, *, block_b, l_out_pad):
    # x_ref : (block_b * l_out_pad, K*C_in)  flattened im2col slab for this block
    # w_ref : (K*C_in, C_out_pad)            fused conv weight (constant map -> resident)
    # b_ref : (1, C_out_pad)                 bias (f32)
    # o_ref : (block_b, C_out_pad)           relu(max_L(conv) + bias)
    # Single fused MXU matmul: M = block_b * l_out_pad rows at once.
    z = jnp.dot(x_ref[...], w_ref[...], preferred_element_type=jnp.float32)
    # Tile-preserving reshape (l_out_pad % 8 == 0, lane dim unchanged), then the
    # length-max. Rows past L_out duplicate the last valid row -> exact under max.
    z = z.reshape(block_b, l_out_pad, z.shape[-1])
    m = jnp.max(z, axis=1)                                   # (block_b, C_out_pad)
    # bias + ReLU after the max (per-channel constant + monotone -> exact)
    o_ref[...] = jnp.maximum(m + b_ref[...], 0.0).astype(o_ref.dtype)


def _pick_batch_block(n, l_out_pad, c_out_pad, x_itemsize, budget_bytes):
    """Largest per-step batch block that fits the VMEM budget.

    Per-sample VMEM cost of one grid step (the KC last dim lane-pads to 128
    inside VMEM -> ~6.4x inflation vs HBM for KC=20):
      x tile   (double-buffered) : 2 * l_out_pad * 128 * x_itemsize
      matmul intermediate (f32)  :     l_out_pad * c_out_pad * 4
      out tile (double-buffered) : 2 * c_out_pad * 4
    """
    per_sample = (2 * l_out_pad * LANE * x_itemsize
                  + l_out_pad * c_out_pad * 4
                  + 2 * c_out_pad * 4)
    b = max(1, budget_bytes // per_sample)
    b = min(b, max(1, (n + 1) // 2))              # keep >= 2 grid steps for large N
    b = max(SUBLANE, (b // SUBLANE) * SUBLANE)    # sublane-aligned output block
    return b


def cnn_forward(x_ncw, weight_oik, bias_o, *, kernel_size=5, stride=1, padding=1,
                compute_dtype=jnp.bfloat16, vmem_limit_mib=48):
    """Pallas implementation of:
         x = Conv1d(C_in, C_out, kernel_size, stride, padding=1)(input)
         x = relu(x)
         return x.max(dim=-1).values
       x_ncw: (N, C_in, L) float32 (PyTorch NCW layout).
       compute_dtype: bf16 (default, f32 accumulation) or f32 (exact).
       vmem_limit_mib: 48 is safe on all generations (v7x has 64 MiB VMEM);
       may be raised to ~96 on v5e/v6e for very large batches."""
    assert stride == 1, "only stride=1 implemented (module default)"
    N, C_in, L = x_ncw.shape
    C_out = weight_oik.shape[0]
    K = kernel_size
    L_out = (L + 2 * padding - K) // stride + 1
    assert L_out >= 1
    KC = K * C_in

    C_out_pad = _round_up(C_out, LANE)
    L_out_pad = _round_up(L_out, SUBLANE)

    x_itemsize = jnp.dtype(compute_dtype).itemsize
    vmem_limit_bytes = vmem_limit_mib << 20
    # headroom for weight/bias buffers + compiler scratch
    budget = max(4 << 20, vmem_limit_bytes - (8 << 20))
    B = _pick_batch_block(N, L_out_pad, C_out_pad, x_itemsize, budget)
    N_pad = _round_up(N, B)
    if N >= 2 and N_pad // B < 2:
        N_pad = 2 * B     # >= 2 grid steps -> batch axis shards across v7x's 2 TCs

    # ---------- wrapper glue (plain JAX): padding / im2col / lane-dense layouts ----------
    x_pad = jnp.pad(x_ncw, ((0, 0), (0, 0), (padding, padding)))     # (N, C_in, L+2p)
    x_lc = jnp.transpose(x_pad, (0, 2, 1))                            # (N, L+2p, C_in)
    # im2col: (N, L_out, K, C_in) -> (N, L_out, K*C_in)
    patches = jnp.stack([x_lc[:, k:k + L_out, :] for k in range(K)], axis=2)
    x_col = patches.reshape(N, L_out, KC)
    # pad length by repeating the last valid row (exact under max, aligns sublanes)
    x_col = jnp.pad(x_col, ((0, 0), (0, L_out_pad - L_out), (0, 0)), mode="edge")
    # pad batch with zeros (sliced away), flatten to a 2-D slab for the fused matmul
    x_col = jnp.pad(x_col, ((0, N_pad - N), (0, 0), (0, 0)))
    x_col = x_col.reshape(N_pad * L_out_pad, KC).astype(compute_dtype)

    # fused weight: W[o, c, k] -> w_col[k*C_in + c, o], lane-padded to C_out_pad
    w_col = jnp.transpose(weight_oik, (2, 1, 0)).reshape(KC, C_out)
    w_col = jnp.pad(w_col, ((0, 0), (0, C_out_pad - C_out))).astype(compute_dtype)
    b_2d = jnp.pad(bias_o, (0, C_out_pad - C_out)).reshape(1, C_out_pad).astype(jnp.float32)

    cost = pl.CostEstimate(
        flops=2 * N * L_out * KC * C_out,
        transcendentals=0,
        bytes_accessed=(x_col.size * x_itemsize + w_col.size * x_itemsize
                        + b_2d.size * 4 + N_pad * C_out_pad * 4),
    )

    kernel = functools.partial(_cnn_kernel, block_b=B, l_out_pad=L_out_pad)
    out = pl.pallas_call(
        kernel,
        out_shape=jax.ShapeDtypeStruct((N_pad, C_out_pad), jnp.float32),
        grid_spec=pltpu.PrefetchScalarGridSpec(
            num_scalar_prefetch=0,
            grid=(N_pad // B,),
            in_specs=[
                pl.BlockSpec((B * L_out_pad, KC), lambda i: (i, 0)),
                # constant index maps -> weight/bias stay VMEM-resident across steps
                pl.BlockSpec((KC, C_out_pad), lambda i: (0, 0)),
                pl.BlockSpec((1, C_out_pad), lambda i: (0, 0)),
            ],
            out_specs=pl.BlockSpec((B, C_out_pad), lambda i: (i, 0)),
        ),
        compiler_params=pltpu.CompilerParams(
            dimension_semantics=("parallel",),
            vmem_limit_bytes=vmem_limit_bytes,
        ),
        cost_estimate=cost,
    )(x_col, w_col, b_2d)

    return out[:N, :C_out]


def _reference(x_ncw, weight_oik, bias_o, *, kernel_size=5, padding=1):
    """Pure-JAX reference matching PyTorch Conv1d semantics (for verification)."""
    N, C_in, L = x_ncw.shape
    K = kernel_size
    x_pad = jnp.pad(x_ncw, ((0, 0), (0, 0), (padding, padding)))
    L_out = L + 2 * padding - K + 1
    patches = jnp.stack([x_pad[:, :, k:k + L_out] for k in range(K)], axis=2)
    conv = jnp.einsum("ncks,ock->nos", patches, weight_oik) + bias_o[None, :, None]
    relu = jnp.maximum(conv, 0.0)
    return jnp.max(relu, axis=-1)


if __name__ == "__main__":
    # Small shapes consistent with the module: batch=2, in_channels=4, L=16
    N, C_in, C_out, L = 2, 4, 8, 16
    K, STRIDE, PAD = 5, 1, 1

    key = jax.random.PRNGKey(0)
    kx, kw, kb = jax.random.split(key, 3)
    x = jax.random.normal(kx, (N, C_in, L), dtype=jnp.float32)
    weight = jax.random.normal(kw, (C_out, C_in, K), dtype=jnp.float32) * 0.1  # (C_out, C_in, K)
    bias = jax.random.normal(kb, (C_out,), dtype=jnp.float32) * 0.1

    ref = _reference(x, weight, bias, kernel_size=K, padding=PAD)

    # exact f32 path
    out_f32 = cnn_forward(x, weight, bias, kernel_size=K, stride=STRIDE, padding=PAD,
                          compute_dtype=jnp.float32)
    out_f32 = jax.block_until_ready(out_f32)
    assert out_f32.shape == (N, C_out), out_f32.shape
    assert jnp.allclose(out_f32, ref, atol=1e-5, rtol=1e-5), (out_f32, ref)

    # default bf16-input path (halved HBM traffic, 2x MXU rate on v6e/v7x), f32 acc
    out_bf16 = cnn_forward(x, weight, bias, kernel_size=K, stride=STRIDE, padding=PAD)
    out_bf16 = jax.block_until_ready(out_bf16)
    assert out_bf16.shape == (N, C_out), out_bf16.shape
    assert jnp.allclose(out_bf16, ref, atol=5e-2, rtol=5e-2), (out_bf16, ref)

    # modestly larger batch to exercise the multi-step grid / block-sizing path
    N2 = 32
    x2 = jax.random.normal(jax.random.PRNGKey(1), (N2, C_in, L), dtype=jnp.float32)
    ref2 = _reference(x2, weight, bias, kernel_size=K, padding=PAD)
    out2 = cnn_forward(x2, weight, bias, kernel_size=K, stride=STRIDE, padding=PAD,
                       compute_dtype=jnp.float32)
    out2 = jax.block_until_ready(out2)
    assert jnp.allclose(out2, ref2, atol=1e-5, rtol=1e-5), (out2, ref2)

    print("KERNEL_OK")
</pallas_src>

<mosaic_0001>
module attributes {stable_mosaic.version = 11 : i64} {
  func.func @_cnn_kernel(%arg0: i32, %arg1: memref<128x20xf32, #tpu.memory_space<vmem>>, %arg2: memref<20x128xf32, #tpu.memory_space<vmem>>, %arg3: memref<1x128xf32, #tpu.memory_space<vmem>>, %arg4: memref<8x128xf32, #tpu.memory_space<vmem>>) attributes {dimension_semantics = [#tpu.dimension_semantics<parallel>], iteration_bounds = array<i64: 2>, scalar_prefetch = 0 : i64, scratch_operands = 0 : i64, tpu.core_type = #tpu.core_type<tc>, window_params = [{transform_indices = @transform_0, window_bounds = array<i64: 128, 20>}, {pipeline_mode = #tpu.pipeline_mode<synchronous>, transform_indices = @transform_1, window_bounds = array<i64: 20, 128>}, {pipeline_mode = #tpu.pipeline_mode<synchronous>, transform_indices = @transform_2, window_bounds = array<i64: 1, 128>}, {transform_indices = @transform_3, window_bounds = array<i64: 8, 128>}]} {
    %c0 = arith.constant 0 : index
    %c0_0 = arith.constant 0 : index
    %0 = vector.load %arg1[%c0, %c0_0] : memref<128x20xf32, #tpu.memory_space<vmem>>, vector<128x20xf32>
    %c0_1 = arith.constant 0 : index
    %c0_2 = arith.constant 0 : index
    %1 = vector.load %arg2[%c0_1, %c0_2] : memref<20x128xf32, #tpu.memory_space<vmem>>, vector<20x128xf32>
    %cst = arith.constant dense<0.000000e+00> : vector<128x128xf32>
    %2 = tpu.matmul %0, %1, %cst {dimension_numbers = #tpu.dot_dimension_numbers<[1], [0], [0], [1], [0, 0, 1, 1], [], []>} : vector<128x20xf32>, vector<20x128xf32>, vector<128x128xf32> -> vector<128x128xf32>
    %3 = vector.shape_cast %2 : vector<128x128xf32> to vector<8x16x128xf32>
    %cst_3 = arith.constant dense<0xFF800000> : vector<8x128xf32>
    %4 = vector.multi_reduction <maximumf>, %3, %cst_3 [1] : vector<8x16x128xf32> to vector<8x128xf32>
    %c0_4 = arith.constant 0 : index
    %c0_5 = arith.constant 0 : index
    %5 = vector.load %arg3[%c0_4, %c0_5] : memref<1x128xf32, #tpu.memory_space<vmem>>, vector<1x128xf32>
    %6 = vector.broadcast %5 : vector<1x128xf32> to vector<8x128xf32>
    %7 = arith.addf %4, %6 : vector<8x128xf32>
    %cst_6 = arith.constant 0.000000e+00 : f32
    %8 = vector.broadcast %cst_6 : f32 to vector<8x128xf32>
    %9 = arith.maximumf %7, %8 : vector<8x128xf32>
    %c0_7 = arith.constant 0 : index
    %c0_8 = arith.constant 0 : index
    %10 = vector.load %arg4[%c0_7, %c0_8] : memref<8x128xf32, #tpu.memory_space<vmem>>, vector<8x128xf32>
    tpu.vector_store %arg4[%c0_7, %c0_8], %9 {strides = array<i32>} : memref<8x128xf32, #tpu.memory_space<vmem>>, vector<8x128xf32>,
    return
  }
  func.func @transform_0(%arg0: i32) -> (i32, i32) {
    %c0_i32 = arith.constant 0 : i32
    %c0_i32_0 = arith.constant 0 : i32
    return %arg0, %c0_i32 : i32, i32
  }
  func.func @transform_1(%arg0: i32) -> (i32, i32) {
    %c0_i32 = arith.constant 0 : i32
    %c0_i32_0 = arith.constant 0 : i32
    %c0_i32_1 = arith.constant 0 : i32
    return %c0_i32, %c0_i32_0 : i32, i32
  }
  func.func @transform_2(%arg0: i32) -> (i32, i32) {
    %c0_i32 = arith.constant 0 : i32
    %c0_i32_0 = arith.constant 0 : i32
    %c0_i32_1 = arith.constant 0 : i32
    return %c0_i32, %c0_i32_0 : i32, i32
  }
  func.func @transform_3(%arg0: i32) -> (i32, i32) {
    %c0_i32 = arith.constant 0 : i32
    %c0_i32_0 = arith.constant 0 : i32
    return %arg0, %c0_i32 : i32, i32
  }
}

</mosaic_0001>

<llo_original>
// kernel: tpu_custom_call.1
$region0: #{tpu_custom_call.1}
  #allocation0 [shape = 'u32[]', space=smem, size = 0x4, offset = 0x4, fixed_abs, tag = 'smem constant byte address 0x4 - core index']
  #allocation1 [shape = 'u32[144,128]{1,0:T(1,128)}', space=vmem, size = 0x12000, scoped, tag = 'internal scratch']
  %s0 = inlined_call_operand.vmem [shape: f32[256,20], index: 0, kind: input, shape index: {}]
  %s1 = inlined_call_operand.vmem [shape: f32[20,128], index: 1, kind: input, shape index: {}]
  %s2 = inlined_call_operand.vmem [shape: f32[1,128], index: 2, kind: input, shape index: {}]
  %s3 = inlined_call_operand.hbm [shape: f32[16,128], index: 3, kind: output, shape index: {}]
  %s4 = sld [smem:[#allocation0]]
  $region45: #{tpu_custom_call.1} parent=0
    _
  %s6 = ssub.s32 1, %s4
  %s7 = scalar_select 0, %s6, %s4
  $region1: #{tpu_custom_call.1} parent=0
    #allocation2 [shape = 'u8[8192]{0}', space=vmem, size = 0x2000, scoped, tag = 'output window, operand 0']
    #allocation3 [shape = 's32[2]{0}', space=sflag, size = 0x8, scoped, tag = 'scoped memory for tpu_custom_call.1']
    %8 = vsyncpa [#allocation3], 0
    %s9 = scalar_lea.sflag [#allocation3], 1
    %10 = vsyncpa %s9, 0
    loop: start=0, step=1, limit=4
    $region2: #{tpu_custom_call.1} parent=1 // loop_pre_header
      _
    $region3: #{tpu_custom_call.1} parent=1 // loop_header
      %s12 = sphi 0, %s16
      %p13 = scmp.ge.s32.totalorder %s12, 4
      %s22 = sphi 0, %s24
      %s25 = sphi 0, %s22
      %s26 = sphi 0, %s25
      %s42 = sphi 0, %s26
      %s46 = sphi 0, %s46
      %s48 = sphi 0, %s46
      %s49 = sphi 0, %s48
      %s63 = sphi 0, %s49
      %s67 = sphi 0, %s67
      %s69 = sphi 0, %s67
      %s70 = sphi 0, %s69
      %s84 = sphi 0, %s70
      %s90 = sphi 0, %s92
      %s93 = sphi 0, %s90
      %s94 = sphi 0, %s93
      %s110 = sphi 0, %s94
    $region4: #{tpu_custom_call.1} parent=1 // loop_header_branch
      %15 = sbr.rel (%p13) target = $region8
    $region5: #{tpu_custom_call.1} parent=1 // loop_body
      %s17 = ssub.s32 %s12, 1
      %s18 = ssub.s32 %s12, 2
      %s19 = sadd.s32 %s12, 1
      %s20 = ssub.s32 %s12, %s19
      %p21 = scmp.eq.s32.totalorder %s20, 0
      %s23 = sadd.s32 %s22, 1
      %s24 = scalar_select %p21, %s22, %s23
      %p27 = pneg %p21
      %p28 = scmp.eq.s32.totalorder %s12, 1
      %p29 = por %p27, %p28
      %p30 = scmp.ne.s32.totalorder %s22, %s25
      %p31 = scmp.eq.s32.totalorder %s12, 0
      %p32 = por %p30, %p31
      %p33 = scmp.ne.s32.totalorder %s22, %s25
      %p34 = scmp.eq.s32.totalorder %s17, 1
      %p35 = por %p33, %p34
      %p36 = scmp.ne.s32.totalorder %s25, %s26
      %p37 = scmp.eq.s32.totalorder %s17, 0
      %p38 = por %p36, %p37
      %p39 = scmp.ne.s32.totalorder %s25, %s26
      %p40 = scmp.eq.s32.totalorder %s18, 1
      %p41 = por %p39, %p40
      %p43 = scmp.ne.s32.totalorder %s26, %s42
      %p44 = scmp.eq.s32.totalorder %s18, 0
      %p45 = por %p43, %p44
      %s47 = sadd.s32 %s46, 1
      %p50 = scmp.eq.s32.totalorder %s12, 1
      %p51 = scmp.ne.s32.totalorder %s46, %s48
      %p52 = scmp.eq.s32.totalorder %s12, 0
      %p53 = por %p51, %p52
      %p54 = scmp.ne.s32.totalorder %s46, %s48
      %p55 = scmp.eq.s32.totalorder %s17, 1
      %p56 = por %p54, %p55
      %p57 = scmp.ne.s32.totalorder %s48, %s49
      %p58 = scmp.eq.s32.totalorder %s17, 0
      %p59 = por %p57, %p58
      %p60 = scmp.ne.s32.totalorder %s48, %s49
      %p61 = scmp.eq.s32.totalorder %s18, 1
      %p62 = por %p60, %p61
      %p64 = scmp.ne.s32.totalorder %s49, %s63
      %p65 = scmp.eq.s32.totalorder %s18, 0
      %p66 = por %p64, %p65
      %s68 = sadd.s32 %s67, 1
      %p71 = scmp.eq.s32.totalorder %s12, 1
      %p72 = scmp.ne.s32.totalorder %s67, %s69
      %p73 = scmp.eq.s32.totalorder %s12, 0
      %p74 = por %p72, %p73
      %p75 = scmp.ne.s32.totalorder %s67, %s69
      %p76 = scmp.eq.s32.totalorder %s17, 1
      %p77 = por %p75, %p76
      %p78 = scmp.ne.s32.totalorder %s69, %s70
      %p79 = scmp.eq.s32.totalorder %s17, 0
      %p80 = por %p78, %p79
      %p81 = scmp.ne.s32.totalorder %s69, %s70
      %p82 = scmp.eq.s32.totalorder %s18, 1
      %p83 = por %p81, %p82
      %p85 = scmp.ne.s32.totalorder %s70, %s84
      %p86 = scmp.eq.s32.totalorder %s18, 0
      %p87 = por %p85, %p86
      %s88 = ssub.s32 %s12, %s19
      %p89 = scmp.eq.s32.totalorder %s88, 0
      %s91 = sadd.s32 %s90, 1
      %s92 = scalar_select %p89, %s90, %s91
      %p95 = pneg %p89
      %p96 = scmp.eq.s32.totalorder %s12, 1
      %p97 = por %p95, %p96
      %p98 = scmp.ne.s32.totalorder %s90, %s93
      %p99 = scmp.eq.s32.totalorder %s12, 0
      %p100 = por %p98, %p99
      %p101 = scmp.ne.s32.totalorder %s90, %s93
      %p102 = scmp.eq.s32.totalorder %s17, 1
      %p103 = por %p101, %p102
      %p104 = scmp.ne.s32.totalorder %s93, %s94
      %p105 = scmp.eq.s32.totalorder %s17, 0
      %p106 = por %p104, %p105
      %p107 = scmp.ne.s32.totalorder %s93, %s94
      %p108 = scmp.eq.s32.totalorder %s18, 1
      %p109 = por %p107, %p108
      %p111 = scmp.ne.s32.totalorder %s94, %s110
      %p112 = scmp.eq.s32.totalorder %s18, 0
      %p113 = por %p111, %p112
      %p114 = scmp.le.s32.totalorder 1, %s12
      %p115 = scmp.lt.s32.totalorder %s12, 3
      %p116 = pnand %p114, %p115
      %p117 = pneg %p116
      // Predicated region
      $region9: #{tpu_custom_call.1} parent=5 // pred_check
        _
      $region10: #{tpu_custom_call.1} parent=5 // pred_check_branch
        %119 = sbr.rel (%p116) target = $region12
      $region11: #{tpu_custom_call.1} parent=5 // pred_region
        %s120 = ssub.s32 %s12, 1
        // Predicated region
        $region13: #{tpu_custom_call.1} parent=11 // pred_check
          %p121 = pneg %p59
        $region14: #{tpu_custom_call.1} parent=11 // pred_check_branch
          %123 = sbr.rel (%p121) target = $region16
        $region15: #{tpu_custom_call.1} parent=11 // pred_region
          _
        $region16: #{tpu_custom_call.1} parent=11 // pred_fallthru
          _
        // Predicated region
        $region17: #{tpu_custom_call.1} parent=11 // pred_check
          %p124 = pneg %p80
        $region18: #{tpu_custom_call.1} parent=11 // pred_check_branch
          %126 = sbr.rel (%p124) target = $region20
        $region19: #{tpu_custom_call.1} parent=11 // pred_region
          _
        $region20: #{tpu_custom_call.1} parent=11 // pred_fallthru
          _
      $region12: #{tpu_custom_call.1} parent=5 // pred_fallthru
        _
      %p127 = scmp.lt.s32.totalorder %s12, 2
      // Predicated region
      $region21: #{tpu_custom_call.1} parent=5 // pred_check
        %p128 = pneg %p127
      $region22: #{tpu_custom_call.1} parent=5 // pred_check_branch
        %130 = sbr.rel (%p128) target = $region24
      $region23: #{tpu_custom_call.1} parent=5 // pred_region
        // Predicated region
        $region25: #{tpu_custom_call.1} parent=23 // pred_check
          %p131 = pneg %p32
        $region26: #{tpu_custom_call.1} parent=23 // pred_check_branch
          %133 = sbr.rel (%p131) target = $region28
        $region27: #{tpu_custom_call.1} parent=23 // pred_region
          %s134 = smul.u32 16, %s12
          %p135 = scmp.lt.s32.totalorder %s134, 31
          %s136 = scalar_select %p135, %s134, 31
          %s137 = smul.addr %s136, 8
          %s138 = scalar_lea.vmem %s0, %s137
          %s139 = smul.u32 16, %s12
        $region28: #{tpu_custom_call.1} parent=23 // pred_fallthru
          _
      $region24: #{tpu_custom_call.1} parent=5 // pred_fallthru
        _
      %p140 = scmp.le.s32.totalorder 1, %s12
      %p141 = scmp.lt.s32.totalorder %s12, 3
      %p142 = pnand %p140, %p141
      %p143 = pneg %p142
      // Predicated region
      $region29: #{tpu_custom_call.1} parent=5 // pred_check
        _
      $region30: #{tpu_custom_call.1} parent=5 // pred_check_branch
        %145 = sbr.rel (%p142) target = $region32
      $region31: #{tpu_custom_call.1} parent=5 // pred_region
        %s146 = ssub.s32 %s12, 1
        %s147 = smul.u32 16, %s17
        %p148 = scmp.lt.s32.totalorder %s147, 31
        %s149 = scalar_select %p148, %s147, 31
        %s150 = smul.addr %s149, 8
        %s151 = scalar_lea.vmem %s0, %s150
        %p152 = pneg %p38
        %p153 = pneg %p35
        %p154 = pneg %p59
        %p155 = pneg %p56
        %p156 = pneg %p80
        %p157 = pneg %p77
        %p158 = pneg %p106
        %p159 = pneg %p103
        %s160 = sand.u32 %s93, 1
        %s161 = scalar_lea.sflag [#allocation3], %s160
        %s162 = sand.u32 %s93, 1
        %s163 = smul.addr %s162, 8
        %s164 = scalar_lea.vmem [#allocation2], %s163
        %s165 = smul.u32 16, %s17
        %p166 = scmp.lt.s32.totalorder %s165, 31
        %s167 = scalar_select %p166, %s165, 31
        %s168 = smul.addr %s167, 8
        %s169 = scalar_lea.vmem %s0, %s168
        %s170 = smul.u32 16, %s17
        %v171 = vld [vmem:[%s169] sm:$0xff]
        %v172 = vld [vmem:[%s169 + $0x8] sm:$0xff]
        %v173 = vld [vmem:[%s169 + $0x10] sm:$0xff]
        %v174 = vld [vmem:[%s169 + $0x18] sm:$0xff]
        %v175 = vld [vmem:[%s169 + $0x20] sm:$0xff]
        %v176 = vld [vmem:[%s169 + $0x28] sm:$0xff]
        %v177 = vld [vmem:[%s169 + $0x30] sm:$0xff]
        %v178 = vld [vmem:[%s169 + $0x38] sm:$0xff]
        %v179 = vld [vmem:[%s169 + $0x40] sm:$0xff]
        %v180 = vld [vmem:[%s169 + $0x48] sm:$0xff]
        %v181 = vld [vmem:[%s169 + $0x50] sm:$0xff]
        %v182 = vld [vmem:[%s169 + $0x58] sm:$0xff]
        %v183 = vld [vmem:[%s169 + $0x60] sm:$0xff]
        %v184 = vld [vmem:[%s169 + $0x68] sm:$0xff]
        %v185 = vld [vmem:[%s169 + $0x70] sm:$0xff]
        %v186 = vld [vmem:[%s169 + $0x78] sm:$0xff]
        %v187 = vld [vmem:[%s1] sm:$0xff]
        %v188 = vld [vmem:[%s1 + $0x8] sm:$0xff]
        %v189 = vld [vmem:[%s1 + $0x10] sm:$0xf]
        %vm190 = vcmask 162816
        %v192 = vsel %vm190, %v171, 0
        %v195 = vsel %vm190, %v172, 0
        %v198 = vsel %vm190, %v173, 0
        %v201 = vsel %vm190, %v174, 0
        %v204 = vsel %vm190, %v175, 0
        %v207 = vsel %vm190, %v176, 0
        %v210 = vsel %vm190, %v177, 0
        %v213 = vsel %vm190, %v178, 0
        %v216 = vsel %vm190, %v179, 0
        %v219 = vsel %vm190, %v180, 0
        %v222 = vsel %vm190, %v181, 0
        %v225 = vsel %vm190, %v182, 0
        %v228 = vsel %vm190, %v183, 0
        %v231 = vsel %vm190, %v184, 0
        %v234 = vsel %vm190, %v185, 0
        %v237 = vsel %vm190, %v186, 0
        %vm239 = vcmask 1043456
        %v241 = vsel %vm239, %v189, 0
        %243 = vmatprep.subr.mxu0 0.0
        %244 = vmatpush1.msra.mxu0 %v187
        %245 = vmatprep.subr.mxu0 0.0
        %246 = vmatpush1.msra.mxu0 %v188
        %247 = vmatprep.subr.mxu0 0.0
        %248 = vmatpush1.msra.mxu0 %v241
        %249 = vmatprep.subr.mxu0 0.0
        %250 = vmatpush1.msra.mxu0 0.0
        %251 = vmatprep.subr.mxu0 0.0
        %252 = vmatpush1.msra.mxu0 0.0
        %253 = vmatprep.subr.mxu0 0.0
        %254 = vmatpush1.msra.mxu0 0.0
        %255 = vmatprep.subr.mxu0 0.0
        %256 = vmatpush1.msra.mxu0 0.0
        %257 = vmatprep.subr.mxu0 0.0
        %258 = vmatpush1.msra.mxu0 0.0
        %259 = vmatprep.subr.mxu0 0.0
        %260 = vmatpush1.msra.mxu0 0.0
        %261 = vmatprep.subr.mxu0 0.0
        %262 = vmatpush1.msra.mxu0 0.0
        %263 = vmatprep.subr.mxu0 0.0
        %264 = vmatpush1.msra.mxu0 0.0
        %265 = vmatprep.subr.mxu0 0.0
        %266 = vmatpush1.msra.mxu0 0.0
        %267 = vmatprep.subr.mxu0 0.0
        %268 = vmatpush1.msra.mxu0 0.0
        %269 = vmatprep.subr.mxu0 0.0
        %270 = vmatpush1.msra.mxu0 0.0
        %271 = vmatprep.subr.mxu0 0.0
        %272 = vmatpush1.msra.mxu0 0.0
        %273 = vmatprep.subr.mxu0 0.0
        %274 = vmatpush1.msra.mxu0 0.0
        %275 = vmatprep.subr.mxu0 0.0
        %276 = vmatpush1.msra.mxu0 0.0
        %277 = vmatprep.subr.mxu0 0.0
        %278 = vmatpush1.msra.mxu0 0.0
        %279 = vmatprep.subr.mxu0 0.0
        %280 = vmatpush1.msra.mxu0 0.0
        %281 = vmatprep.subr.mxu0 0.0
        %282 = vmatpush1.msra.mxu0 0.0
        %283 = vmatprep.subr.mxu0 0.0
        %284 = vmatpush1.msra.mxu0 0.0
        %285 = vmatprep.subr.mxu0 0.0
        %286 = vmatpush1.msra.mxu0 0.0
        %287 = vmatprep.subr.mxu0 0.0
        %288 = vmatpush1.msra.mxu0 0.0
        %289 = vmatprep.subr.mxu0 0.0
        %290 = vmatpush1.msra.mxu0 0.0
        %291 = vmatprep.subr.mxu0 0.0
        %292 = vmatpush1.msra.mxu0 0.0
        %293 = vmatprep.subr.mxu0 0.0
        %294 = vmatpush1.msra.mxu0 0.0
        %295 = vmatprep.subr.mxu0 0.0
        %296 = vmatpush1.msra.mxu0 0.0
        %297 = vmatprep.subr.mxu0 0.0
        %298 = vmatpush1.msra.mxu0 0.0
        %299 = vmatprep.subr.mxu0 0.0
        %300 = vmatpush1.msra.mxu0 0.0
        %301 = vmatprep.subr.mxu0 0.0
        %302 = vmatpush1.msra.mxu0 0.0
        %303 = vmatprep.subr.mxu0 0.0
        %304 = vmatpush1.msra.mxu0 0.0
        %305 = vmatprep.subr.mxu0 0.0
        %306 = vmatpush1.msra.mxu0 0.0
        %307 = vmatprep.mubr.f32.mxu0 0.0
        %308 = vmatmul.mubr.f32.gmra.mrb[0].mxu0 %v192
        %v309 = vpop.f32.mrb[0].mxu0
        %v310 = vadd.f32 0.0, %v309
        %v311 = vpop.f32.mrb[0].mxu0
        %312 = vmatprep.mubr.f32.mxu0 0.0
        %313 = vmatmul.mubr.f32.gmra.mrb[0].mxu0 %v195
        %v314 = vpop.f32.mrb[0].mxu0
        %v315 = vadd.f32 0.0, %v314
        %v316 = vpop.f32.mrb[0].mxu0
        %317 = vmatprep.mubr.f32.mxu0 0.0
        %318 = vmatmul.mubr.f32.gmra.mrb[0].mxu0 %v198
        %v319 = vpop.f32.mrb[0].mxu0
        %v320 = vadd.f32 0.0, %v319
        %v321 = vpop.f32.mrb[0].mxu0
        %322 = vmatprep.mubr.f32.mxu0 0.0
        %323 = vmatmul.mubr.f32.gmra.mrb[0].mxu0 %v201
        %v324 = vpop.f32.mrb[0].mxu0
        %v325 = vadd.f32 0.0, %v324
        %v326 = vpop.f32.mrb[0].mxu0
        %327 = vmatprep.mubr.f32.mxu0 0.0
        %328 = vmatmul.mubr.f32.gmra.mrb[0].mxu0 %v204
        %v329 = vpop.f32.mrb[0].mxu0
        %v330 = vadd.f32 0.0, %v329
        %v331 = vpop.f32.mrb[0].mxu0
        %332 = vmatprep.mubr.f32.mxu0 0.0
        %333 = vmatmul.mubr.f32.gmra.mrb[0].mxu0 %v207
        %v334 = vpop.f32.mrb[0].mxu0
        %v335 = vadd.f32 0.0, %v334
        %v336 = vpop.f32.mrb[0].mxu0
        %337 = vmatprep.mubr.f32.mxu0 0.0
        %338 = vmatmul.mubr.f32.gmra.mrb[0].mxu0 %v210
        %v339 = vpop.f32.mrb[0].mxu0
        %v340 = vadd.f32 0.0, %v339
        %v341 = vpop.f32.mrb[0].mxu0
        %342 = vmatprep.mubr.f32.mxu0 0.0
        %343 = vmatmul.mubr.f32.gmra.mrb[0].mxu0 %v213
        %v344 = vpop.f32.mrb[0].mxu0
        %v345 = vadd.f32 0.0, %v344
        %v346 = vpop.f32.mrb[0].mxu0
        %347 = vmatprep.mubr.f32.mxu0 0.0
        %348 = vmatmul.mubr.f32.gmra.mrb[0].mxu0 %v216
        %v349 = vpop.f32.mrb[0].mxu0
        %v350 = vadd.f32 0.0, %v349
        %v351 = vpop.f32.mrb[0].mxu0
        %352 = vmatprep.mubr.f32.mxu0 0.0
        %353 = vmatmul.mubr.f32.gmra.mrb[0].mxu0 %v219
        %v354 = vpop.f32.mrb[0].mxu0
        %v355 = vadd.f32 0.0, %v354
        %v356 = vpop.f32.mrb[0].mxu0
        %357 = vmatprep.mubr.f32.mxu0 0.0
        %358 = vmatmul.mubr.f32.gmra.mrb[0].mxu0 %v222
        %v359 = vpop.f32.mrb[0].mxu0
        %v360 = vadd.f32 0.0, %v359
        %v361 = vpop.f32.mrb[0].mxu0
        %362 = vmatprep.mubr.f32.mxu0 0.0
        %363 = vmatmul.mubr.f32.gmra.mrb[0].mxu0 %v225
        %v364 = vpop.f32.mrb[0].mxu0
        %v365 = vadd.f32 0.0, %v364
        %v366 = vpop.f32.mrb[0].mxu0
        %367 = vmatprep.mubr.f32.mxu0 0.0
        %368 = vmatmul.mubr.f32.gmra.mrb[0].mxu0 %v228
        %v369 = vpop.f32.mrb[0].mxu0
        %v370 = vadd.f32 0.0, %v369
        %v371 = vpop.f32.mrb[0].mxu0
        %372 = vmatprep.mubr.f32.mxu0 0.0
        %373 = vmatmul.mubr.f32.gmra.mrb[0].mxu0 %v231
        %v374 = vpop.f32.mrb[0].mxu0
        %v375 = vadd.f32 0.0, %v374
        %v376 = vpop.f32.mrb[0].mxu0
        %377 = vmatprep.mubr.f32.mxu0 0.0
        %378 = vmatmul.mubr.f32.gmra.mrb[0].mxu0 %v234
        %v379 = vpop.f32.mrb[0].mxu0
        %v380 = vadd.f32 0.0, %v379
        %v381 = vpop.f32.mrb[0].mxu0
        %382 = vmatprep.mubr.f32.mxu0 0.0
        %383 = vmatmul.mubr.f32.gmra.mrb[0].mxu0 %v237
        %v384 = vpop.f32.mrb[0].mxu0
        %v385 = vadd.f32 0.0, %v384
        %v386 = vpop.f32.mrb[0].mxu0
        %387 = vdwg.mxu0
        %v388 = vmax.f32 %v310, %v315
        %v389 = vrot.slane %v388, 4
        %v390 = vmax.f32 %v388, %v389
        %v391 = vrot.slane %v390, 2
        %v392 = vmax.f32 %v390, %v391
        %v393 = vrot.slane %v392, 1
        %v394 = vmax.f32 %v392, %v393
        %v395 = vmax.f32 %v320, %v325
        %v396 = vrot.slane %v395, 4
        %v397 = vmax.f32 %v395, %v396
        %v398 = vrot.slane %v397, 2
        %v399 = vmax.f32 %v397, %v398
        %v400 = vrot.slane %v399, 1
        %v401 = vmax.f32 %v399, %v400
        %v402 = vmax.f32 %v330, %v335
        %v403 = vrot.slane %v402, 4
        %v404 = vmax.f32 %v402, %v403
        %v405 = vrot.slane %v404, 2
        %v406 = vmax.f32 %v404, %v405
        %v407 = vrot.slane %v406, 1
        %v408 = vmax.f32 %v406, %v407
        %v409 = vmax.f32 %v340, %v345
        %v410 = vrot.slane %v409, 4
        %v411 = vmax.f32 %v409, %v410
        %v412 = vrot.slane %v411, 2
        %v413 = vmax.f32 %v411, %v412
        %v414 = vrot.slane %v413, 1
        %v415 = vmax.f32 %v413, %v414
        %v416 = vmax.f32 %v350, %v355
        %v417 = vrot.slane %v416, 4
        %v418 = vmax.f32 %v416, %v417
        %v419 = vrot.slane %v418, 2
        %v420 = vmax.f32 %v418, %v419
        %v421 = vrot.slane %v420, 1
        %v422 = vmax.f32 %v420, %v421
        %v423 = vmax.f32 %v360, %v365
        %v424 = vrot.slane %v423, 4
        %v425 = vmax.f32 %v423, %v424
        %v426 = vrot.slane %v425, 2
        %v427 = vmax.f32 %v425, %v426
        %v428 = vrot.slane %v427, 1
        %v429 = vmax.f32 %v427, %v428
        %v430 = vmax.f32 %v370, %v375
        %v431 = vrot.slane %v430, 4
        %v432 = vmax.f32 %v430, %v431
        %v433 = vrot.slane %v432, 2
        %v434 = vmax.f32 %v432, %v433
        %v435 = vrot.slane %v434, 1
        %v436 = vmax.f32 %v434, %v435
        %v437 = vmax.f32 %v380, %v385
        %v438 = vrot.slane %v437, 4
        %v439 = vmax.f32 %v437, %v438
        %v440 = vrot.slane %v439, 2
        %v441 = vmax.f32 %v439, %v440
        %v442 = vrot.slane %v441, 1
        %v443 = vmax.f32 %v441, %v442
        %v444 = vld [vmem:[%s2] sm:$0x1]
        %v446 = vlaneseq
        %v447 = vshrl.u32 %v446, 7
        %v448 = vsub.s32 0, %v447
        %v449 = vrot.slane %v444, %v448
        %v451 = vadd.f32 %v394, %v449
        %v452 = vadd.f32 %v401, %v449
        %v453 = vadd.f32 %v408, %v449
        %v454 = vadd.f32 %v415, %v449
        %v455 = vadd.f32 %v422, %v449
        %v456 = vadd.f32 %v429, %v449
        %v457 = vadd.f32 %v436, %v449
        %v458 = vadd.f32 %v443, %v449
        %v459 = vmax.f32 %v451, 0.0
        %v460 = vmax.f32 %v452, 0.0
        %v461 = vmax.f32 %v453, 0.0
        %v462 = vmax.f32 %v454, 0.0
        %v463 = vmax.f32 %v455, 0.0
        %v464 = vmax.f32 %v456, 0.0
        %v465 = vmax.f32 %v457, 0.0
        %v466 = vmax.f32 %v458, 0.0
        %v475 = vrot.slane %v460, 7
        %vm476 = vcmask 1041409
        %v477 = vsel %vm476, %v475, %v459
        %v478 = vrot.slane %v461, 6
        %vm479 = vcmask 1042434
        %v480 = vsel %vm479, %v478, %v477
        %v481 = vrot.slane %v462, 5
        %vm482 = vcmask 1043459
        %v483 = vsel %vm482, %v481, %v480
        %v484 = vrot.slane %v463, 4
        %vm485 = vcmask 1044484
        %v486 = vsel %vm485, %v484, %v483
        %v487 = vrot.slane %v464, 3
        %vm488 = vcmask 1045509
        %v489 = vsel %vm488, %v487, %v486
        %v490 = vrot.slane %v465, 2
        %vm491 = vcmask 1046534
        %v492 = vsel %vm491, %v490, %v489
        %v493 = vrot.slane %v466, 1
        %vm494 = vcmask 1047559
        %v495 = vsel %vm494, %v493, %v492
        %497 = vst [vmem:[%s164] sm:$0xff] %v495
        %s498 = sand.u32 %s93, 1
        %s499 = scalar_lea.sflag [#allocation3], %s498
        %s500 = sand.u32 %s93, 1
        %s501 = smul.addr %s500, 8
        %s502 = scalar_lea.vmem [#allocation2], %s501
        // Predicated region
        $region33: #{tpu_custom_call.1} parent=31 // pred_check
          %p503 = pneg %p103
        $region34: #{tpu_custom_call.1} parent=31 // pred_check_branch
          %505 = sbr.rel (%p503) target = $region36
        $region35: #{tpu_custom_call.1} parent=31 // pred_region
          %s507 = ssub.s32 128, 128
          %508 = vsyncadd %s499, %s507
          %s509 = smul.addr %s17, 128
          %s510 = scalar_lea.hbm %s3, %s509
          %s512 = sshll.u32 %s502, 4
          %s513 = int_to_ptr.vmem [resolvable:$true] %s512
          %515 = dma.vmem_to_hbm [thread:$0]  %s513, 128, %s510, %s499
        $region36: #{tpu_custom_call.1} parent=31 // pred_fallthru
          _
      $region32: #{tpu_custom_call.1} parent=5 // pred_fallthru
        _
      %p516 = scmp.le.s32.totalorder 2, %s12
      // Predicated region
      $region37: #{tpu_custom_call.1} parent=5 // pred_check
        %p517 = pneg %p516
      $region38: #{tpu_custom_call.1} parent=5 // pred_check_branch
        %519 = sbr.rel (%p517) target = $region40
      $region39: #{tpu_custom_call.1} parent=5 // pred_region
        %s520 = ssub.s32 %s12, 2
        // Predicated region
        $region41: #{tpu_custom_call.1} parent=39 // pred_check
          %p521 = pneg %p109
        $region42: #{tpu_custom_call.1} parent=39 // pred_check_branch
          %523 = sbr.rel (%p521) target = $region44
        $region43: #{tpu_custom_call.1} parent=39 // pred_region
          %s524 = sand.u32 %s94, 1
          %s525 = scalar_lea.sflag [#allocation3], %s524
          %s526 = sand.u32 %s94, 1
          %s527 = smul.addr %s526, 8
          %s528 = scalar_lea.vmem [#allocation2], %s527
          %529 = dma.done %s525, 128
        $region44: #{tpu_custom_call.1} parent=39 // pred_fallthru
          _
      $region40: #{tpu_custom_call.1} parent=5 // pred_fallthru
        _
    $region6: #{tpu_custom_call.1} parent=1 // loop_footer
      %s16 = sadd.s32 1, %s12
    $region7: #{tpu_custom_call.1} parent=1 // loop_footer_branch
      %11 = sbr.rel target = $region3
    $region8: #{tpu_custom_call.1} parent=1 // loop_exit
      _
    %530 = vsyncpa [#allocation3], 1
    %s531 = scalar_lea.sflag [#allocation3], 1
    %532 = vsyncpa %s531, 1

</llo_original>
